<compile_context>
chip_gen: v6e
topology: v6e:2x2x1
jax: 0.10.0
libtpu: 0.0.40
codegen_flags: <defaults>
</compile_context>

<pallas_src>
import functools

import jax
import jax.numpy as jnp
from jax import lax
from jax.experimental import pallas as pl
from jax.experimental.pallas import tpu as pltpu


def attention_kernel(x_ref, wqkv_ref, premix_ref, postmix_ref, col0_ref,
                     woutb_ref, o_ref, qkv_ref, acc_ref, *, heads, dim_head):
    bb, n, d_model = x_ref.shape
    inner = heads * dim_head

    # ---- fused QKV projection for the whole batch block: one wide matmul ----
    x_all = x_ref[...].reshape(bb * n, d_model)
    qkv_ref[...] = jnp.dot(x_all, wqkv_ref[...],
                           preferred_element_type=jnp.float32)

    # Loop-invariant small operands, hoisted once per grid step.
    premix = premix_ref[...]           # (H*n, inner): mix_pre[h, g] expanded
    postmix = postmix_ref[...]         # (H*n, inner): mix_post[h, g] expanded
    col0_val = col0_ref[...]           # (H*n, 1): -987654321 * sum_h mix_pre[h, g]
    col0_mask = lax.broadcasted_iota(jnp.int32, (heads * n, n), 1) == 0

    def per_batch(row0):
        qkv = qkv_ref[pl.ds(row0, n), :]                 # (n, 3*inner)
        q = qkv[:, :inner]                               # scale already folded in
        k = qkv[:, inner:2 * inner]
        v = qkv[:, 2 * inner:]

        # Heads packed along sublanes: row-block g below corresponds to head g.
        # Pre-mix folded into Q (masked col-0 is fully overwritten afterwards).
        q_mix = jnp.tile(q, (heads, 1)) * premix         # (H*n, inner)
        dots = lax.dot_general(q_mix, k, (((1,), (1,)), ((), ())),
                               preferred_element_type=jnp.float32)   # (H*n, n)
        dots = jnp.where(col0_mask, col0_val, dots)

        # Softmax over keys (lane axis), all heads in one tile.
        m = jnp.max(dots, axis=-1, keepdims=True)
        e = jnp.exp(dots - m)
        s = jnp.sum(e, axis=-1, keepdims=True)
        attn = e * pl.reciprocal(s, approx=False)

        # Value weighting for all heads in one matmul; post-mix folded into the
        # head-collapse: block (h, g) of av is scaled by mix_post[h, g], sum_h.
        av = jnp.dot(attn, v, preferred_element_type=jnp.float32)    # (H*n, inner)
        avp = av * postmix
        out = avp[0:n, :]
        for h in range(1, heads):
            out = out + avp[h * n:(h + 1) * n, :]                    # (n, inner)
        acc_ref[pl.ds(row0, n), :] = out

    if bb <= 8:
        for bi in range(bb):
            per_batch(bi * n)
    else:
        def loop_body(bi, carry):
            per_batch(pl.multiple_of(bi * n, n))
            return carry
        lax.fori_loop(0, bb, loop_body, 0, unroll=2)

    # ---- single output projection (+ bias row) for the whole batch block ----
    y = jnp.dot(acc_ref[...], woutb_ref[pl.ds(0, inner), :],
                preferred_element_type=jnp.float32)
    y = y + woutb_ref[pl.ds(inner, 1), :]
    o_ref[...] = y.reshape(bb, n, d_model).astype(o_ref.dtype)


def _pick_batch_block(batch, seq_len, target_rows=128):
    """Smallest divisor of `batch` giving >= target_rows QKV-matmul rows/step."""
    target = max(1, -(-target_rows // seq_len))
    best = 1
    for d in range(1, batch + 1):
        if batch % d == 0:
            best = d
            if d >= target:
                return d
    return best


def lmsa_attention(x, params, *, heads, dim_head, batch_block=None):
    # TODO(synk): cross-attention (context is not None) is not implemented.
    B, N, D = x.shape
    inner = heads * dim_head
    neg = jnp.float32(-987654321.0)

    # ---- wrapper-side parameter plumbing (outside the kernel, fused by XLA) --
    scale = params["scale"].reshape(heads)
    w_q_scaled = params["w_q"] * jnp.repeat(scale, dim_head)[None, :]     # (D, inner)
    w_qkv = jnp.concatenate([w_q_scaled, params["w_kv"]], axis=1)         # (D, 3*inner)
    w_out_b = jnp.concatenate([params["w_out"],
                               params["b_out"].reshape(1, D)], axis=0)    # (inner+1, D)
    ones_blk = jnp.ones((N, dim_head), jnp.float32)
    premix = jnp.kron(params["mix_pre"].T, ones_blk)                      # (H*N, inner)
    postmix = jnp.kron(params["mix_post"], ones_blk)                      # (H*N, inner)
    col0 = jnp.repeat(neg * params["mix_pre"].sum(axis=0), N)[:, None]    # (H*N, 1)

    if batch_block is None or B % batch_block != 0:
        batch_block = _pick_batch_block(B, N)
    grid = (B // batch_block,)

    kernel = functools.partial(attention_kernel, heads=heads, dim_head=dim_head)
    full2 = lambda b: (0, 0)

    return pl.pallas_call(
        kernel,
        out_shape=jax.ShapeDtypeStruct((B, N, D), x.dtype),
        grid_spec=pltpu.PrefetchScalarGridSpec(
            num_scalar_prefetch=0,
            grid=grid,
            in_specs=[
                pl.BlockSpec((batch_block, N, D), lambda b: (b, 0, 0)),   # x
                pl.BlockSpec((D, 3 * inner), full2),                      # fused W_qkv
                pl.BlockSpec((heads * N, inner), full2),                  # pre-mix expand
                pl.BlockSpec((heads * N, inner), full2),                  # post-mix expand
                pl.BlockSpec((heads * N, 1), full2),                      # masked col-0 value
                pl.BlockSpec((inner + 1, D), full2),                      # [W_out; b_out]
            ],
            out_specs=pl.BlockSpec((batch_block, N, D), lambda b: (b, 0, 0)),
            scratch_shapes=[
                pltpu.VMEM((batch_block * N, 3 * inner), jnp.float32),    # qkv block
                pltpu.VMEM((batch_block * N, inner), jnp.float32),        # head-merged out
            ],
        ),
        compiler_params=pltpu.CompilerParams(
            dimension_semantics=("parallel",)),
    )(x, w_qkv, premix, postmix, col0, w_out_b)


def lmsa_attention_ref(x, params, *, heads, dim_head):
    """Pure-JAX reference mirroring the PyTorch forward exactly."""
    B, N, D = x.shape
    inner = heads * dim_head
    q = x @ params["w_q"]
    kv = x @ params["w_kv"]
    k, v = kv[..., :inner], kv[..., inner:]
    split = lambda t: t.reshape(B, N, heads, dim_head).transpose(0, 2, 1, 3)
    q, k, v = split(q), split(k), split(v)
    dots = jnp.einsum('bhid,bhjd->bhij', q, k) * params["scale"].reshape(1, heads, 1, 1)
    dots = dots.at[:, :, :, 0].set(-987654321.0)
    dots = jnp.einsum('bhij,hg->bgij', dots, params["mix_pre"])
    attn = jax.nn.softmax(dots, axis=-1)
    attn = jnp.einsum('bhij,hg->bgij', attn, params["mix_post"])
    out = jnp.einsum('bhij,bhjd->bhid', attn, v)
    out = out.transpose(0, 2, 1, 3).reshape(B, N, inner)
    return out @ params["w_out"] + params["b_out"]


def make_params(key, dim, heads, dim_head):
    inner = heads * dim_head
    ks = jax.random.split(key, 6)
    return {
        # Linear weights stored as (in_features, out_features)
        "w_q": jax.random.normal(ks[0], (dim, inner), jnp.float32) * 0.05,
        "w_kv": jax.random.normal(ks[1], (dim, 2 * inner), jnp.float32) * 0.05,
        "w_out": jax.random.normal(ks[2], (inner, dim), jnp.float32) * 0.05,
        "b_out": jax.random.normal(ks[3], (1, dim), jnp.float32) * 0.05,
        "mix_pre": jax.random.normal(ks[4], (heads, heads), jnp.float32),
        "mix_post": jax.random.normal(ks[5], (heads, heads), jnp.float32),
        # self.scale = nn.Parameter(dim_head**-0.5 * torch.ones(heads))
        "scale": jnp.full((heads, 1), dim_head ** (-0.5), jnp.float32),
    }


if __name__ == "__main__":
    B, N, DIM = 2, 8, 32
    HEADS, DIM_HEAD = 4, 16

    key = jax.random.PRNGKey(0)
    kx, kp = jax.random.split(key)
    x = jax.random.normal(kx, (B, N, DIM), jnp.float32)
    params = make_params(kp, DIM, HEADS, DIM_HEAD)

    out = lmsa_attention(x, params, heads=HEADS, dim_head=DIM_HEAD)
    out = jax.block_until_ready(out)

    ref = lmsa_attention_ref(x, params, heads=HEADS, dim_head=DIM_HEAD)
    assert out.shape == (B, N, DIM)
    assert jnp.allclose(out, ref, atol=1e-4, rtol=1e-4), "mismatch vs reference"

    print("KERNEL_OK")
</pallas_src>

<mosaic_0001>
module attributes {stable_mosaic.version = 11 : i64} {
  func.func @attention_kernel(%arg0: i32, %arg1: memref<2x8x32xf32, #tpu.memory_space<vmem>>, %arg2: memref<32x192xf32, #tpu.memory_space<vmem>>, %arg3: memref<32x64xf32, #tpu.memory_space<vmem>>, %arg4: memref<32x64xf32, #tpu.memory_space<vmem>>, %arg5: memref<32x1xf32, #tpu.memory_space<vmem>>, %arg6: memref<65x32xf32, #tpu.memory_space<vmem>>, %arg7: memref<2x8x32xf32, #tpu.memory_space<vmem>>, %arg8: memref<16x192xf32, #tpu.memory_space<vmem>>, %arg9: memref<16x64xf32, #tpu.memory_space<vmem>>) attributes {dimension_semantics = [#tpu.dimension_semantics<parallel>], iteration_bounds = array<i64: 1>, scalar_prefetch = 0 : i64, scratch_operands = 2 : i64, tpu.core_type = #tpu.core_type<tc>, window_params = [{transform_indices = @transform_0, window_bounds = array<i64: 2, 8, 32>}, {pipeline_mode = #tpu.pipeline_mode<synchronous>, transform_indices = @transform_1, window_bounds = array<i64: 32, 192>}, {pipeline_mode = #tpu.pipeline_mode<synchronous>, transform_indices = @transform_2, window_bounds = array<i64: 32, 64>}, {pipeline_mode = #tpu.pipeline_mode<synchronous>, transform_indices = @transform_3, window_bounds = array<i64: 32, 64>}, {pipeline_mode = #tpu.pipeline_mode<synchronous>, transform_indices = @transform_4, window_bounds = array<i64: 32, 1>}, {pipeline_mode = #tpu.pipeline_mode<synchronous>, transform_indices = @transform_5, window_bounds = array<i64: 65, 32>}, {transform_indices = @transform_6, window_bounds = array<i64: 2, 8, 32>}]} {
    %c0 = arith.constant 0 : index
    %c0_0 = arith.constant 0 : index
    %c0_1 = arith.constant 0 : index
    %0 = vector.load %arg1[%c0, %c0_0, %c0_1] : memref<2x8x32xf32, #tpu.memory_space<vmem>>, vector<2x8x32xf32>
    %1 = vector.shape_cast %0 : vector<2x8x32xf32> to vector<16x32xf32>
    %c0_2 = arith.constant 0 : index
    %c0_3 = arith.constant 0 : index
    %2 = vector.load %arg2[%c0_2, %c0_3] : memref<32x192xf32, #tpu.memory_space<vmem>>, vector<32x192xf32>
    %cst = arith.constant dense<0.000000e+00> : vector<16x192xf32>
    %3 = tpu.matmul %1, %2, %cst {dimension_numbers = #tpu.dot_dimension_numbers<[1], [0], [0], [1], [0, 0, 1, 1], [], []>} : vector<16x32xf32>, vector<32x192xf32>, vector<16x192xf32> -> vector<16x192xf32>
    %c0_4 = arith.constant 0 : index
    %c0_5 = arith.constant 0 : index
    %4 = vector.load %arg8[%c0_4, %c0_5] : memref<16x192xf32, #tpu.memory_space<vmem>>, vector<16x192xf32>
    tpu.vector_store %arg8[%c0_4, %c0_5], %3 {strides = array<i32>} : memref<16x192xf32, #tpu.memory_space<vmem>>, vector<16x192xf32>,
    %c0_6 = arith.constant 0 : index
    %c0_7 = arith.constant 0 : index
    %5 = vector.load %arg3[%c0_6, %c0_7] : memref<32x64xf32, #tpu.memory_space<vmem>>, vector<32x64xf32>
    %c0_8 = arith.constant 0 : index
    %c0_9 = arith.constant 0 : index
    %6 = vector.load %arg4[%c0_8, %c0_9] : memref<32x64xf32, #tpu.memory_space<vmem>>, vector<32x64xf32>
    %c0_10 = arith.constant 0 : index
    %c0_11 = arith.constant 0 : index
    %7 = vector.load %arg5[%c0_10, %c0_11] : memref<32x1xf32, #tpu.memory_space<vmem>>, vector<32x1xf32>
    %8 = tpu.iota {dimensions = array<i32: 1>} : vector<32x8xi32>
    %c0_i32 = arith.constant 0 : i32
    %9 = vector.broadcast %c0_i32 : i32 to vector<32x8xi32>
    %10 = arith.cmpi eq, %8, %9 : vector<32x8xi32>
    %c0_12 = arith.constant 0 : index
    %c0_13 = arith.constant 0 : index
    %11 = vector.load %arg8[%c0_12, %c0_13] : memref<16x192xf32, #tpu.memory_space<vmem>>, vector<8x192xf32>
    %12 = vector.extract_strided_slice %11 {offsets = [0, 0], sizes = [8, 64], strides = [1, 1]} : vector<8x192xf32> to vector<8x64xf32>
    %13 = vector.extract_strided_slice %11 {offsets = [0, 64], sizes = [8, 64], strides = [1, 1]} : vector<8x192xf32> to vector<8x64xf32>
    %14 = vector.extract_strided_slice %11 {offsets = [0, 128], sizes = [8, 64], strides = [1, 1]} : vector<8x192xf32> to vector<8x64xf32>
    %15 = tpu.concatenate %12, %12, %12, %12 in 0 : vector<8x64xf32>, vector<8x64xf32>, vector<8x64xf32>, vector<8x64xf32> -> vector<32x64xf32>
    %16 = arith.mulf %15, %5 : vector<32x64xf32>
    %cst_14 = arith.constant dense<0.000000e+00> : vector<32x8xf32>
    %17 = tpu.matmul %16, %13, %cst_14 {dimension_numbers = #tpu.dot_dimension_numbers<[1], [1], [0], [0], [0, 0, 1, 0], [], []>} : vector<32x64xf32>, vector<8x64xf32>, vector<32x8xf32> -> vector<32x8xf32>
    %18 = vector.shape_cast %7 : vector<32x1xf32> to vector<32x1xf32>
    %19 = vector.broadcast %18 : vector<32x1xf32> to vector<32x8xf32>
    %20 = arith.select %10, %19, %17 : vector<32x8xi1>, vector<32x8xf32>
    %cst_15 = arith.constant dense<0xFF800000> : vector<32xf32>
    %21 = vector.multi_reduction <maximumf>, %20, %cst_15 [1] : vector<32x8xf32> to vector<32xf32>
    %22 = vector.shape_cast %21 : vector<32xf32> to vector<32x1xf32>
    %23 = vector.broadcast %22 : vector<32x1xf32> to vector<32x8xf32>
    %24 = arith.subf %20, %23 : vector<32x8xf32>
    %25 = math.exp %24 : vector<32x8xf32>
    %cst_16 = arith.constant dense<0.000000e+00> : vector<32xf32>
    %26 = vector.multi_reduction <add>, %25, %cst_16 [1] : vector<32x8xf32> to vector<32xf32>
    %27 = vector.shape_cast %26 : vector<32xf32> to vector<32x1xf32>
    %28 = tpu.reciprocal %27 : vector<32x1xf32> -> vector<32x1xf32>
    %29 = vector.broadcast %28 : vector<32x1xf32> to vector<32x8xf32>
    %30 = arith.mulf %25, %29 : vector<32x8xf32>
    %cst_17 = arith.constant dense<0.000000e+00> : vector<32x64xf32>
    %31 = tpu.matmul %30, %14, %cst_17 {dimension_numbers = #tpu.dot_dimension_numbers<[1], [0], [0], [1], [0, 0, 1, 1], [], []>} : vector<32x8xf32>, vector<8x64xf32>, vector<32x64xf32> -> vector<32x64xf32>
    %32 = arith.mulf %31, %6 : vector<32x64xf32>
    %33 = vector.extract_strided_slice %32 {offsets = [0, 0], sizes = [8, 64], strides = [1, 1]} : vector<32x64xf32> to vector<8x64xf32>
    %34 = vector.extract_strided_slice %32 {offsets = [8, 0], sizes = [8, 64], strides = [1, 1]} : vector<32x64xf32> to vector<8x64xf32>
    %35 = arith.addf %33, %34 : vector<8x64xf32>
    %36 = vector.extract_strided_slice %32 {offsets = [16, 0], sizes = [8, 64], strides = [1, 1]} : vector<32x64xf32> to vector<8x64xf32>
    %37 = arith.addf %35, %36 : vector<8x64xf32>
    %38 = vector.extract_strided_slice %32 {offsets = [24, 0], sizes = [8, 64], strides = [1, 1]} : vector<32x64xf32> to vector<8x64xf32>
    %39 = arith.addf %37, %38 : vector<8x64xf32>
    %c0_18 = arith.constant 0 : index
    %c0_19 = arith.constant 0 : index
    %40 = vector.load %arg9[%c0_18, %c0_19] : memref<16x64xf32, #tpu.memory_space<vmem>>, vector<8x64xf32>
    tpu.vector_store %arg9[%c0_18, %c0_19], %39 {strides = array<i32>} : memref<16x64xf32, #tpu.memory_space<vmem>>, vector<8x64xf32>,
    %c8 = arith.constant 8 : index
    %c0_20 = arith.constant 0 : index
    %41 = vector.load %arg8[%c8, %c0_20] : memref<16x192xf32, #tpu.memory_space<vmem>>, vector<8x192xf32>
    %42 = vector.extract_strided_slice %41 {offsets = [0, 0], sizes = [8, 64], strides = [1, 1]} : vector<8x192xf32> to vector<8x64xf32>
    %43 = vector.extract_strided_slice %41 {offsets = [0, 64], sizes = [8, 64], strides = [1, 1]} : vector<8x192xf32> to vector<8x64xf32>
    %44 = vector.extract_strided_slice %41 {offsets = [0, 128], sizes = [8, 64], strides = [1, 1]} : vector<8x192xf32> to vector<8x64xf32>
    %45 = tpu.concatenate %42, %42, %42, %42 in 0 : vector<8x64xf32>, vector<8x64xf32>, vector<8x64xf32>, vector<8x64xf32> -> vector<32x64xf32>
    %46 = arith.mulf %45, %5 : vector<32x64xf32>
    %cst_21 = arith.constant dense<0.000000e+00> : vector<32x8xf32>
    %47 = tpu.matmul %46, %43, %cst_21 {dimension_numbers = #tpu.dot_dimension_numbers<[1], [1], [0], [0], [0, 0, 1, 0], [], []>} : vector<32x64xf32>, vector<8x64xf32>, vector<32x8xf32> -> vector<32x8xf32>
    %48 = vector.shape_cast %7 : vector<32x1xf32> to vector<32x1xf32>
    %49 = vector.broadcast %48 : vector<32x1xf32> to vector<32x8xf32>
    %50 = arith.select %10, %49, %47 : vector<32x8xi1>, vector<32x8xf32>
    %cst_22 = arith.constant dense<0xFF800000> : vector<32xf32>
    %51 = vector.multi_reduction <maximumf>, %50, %cst_22 [1] : vector<32x8xf32> to vector<32xf32>
    %52 = vector.shape_cast %51 : vector<32xf32> to vector<32x1xf32>
    %53 = vector.broadcast %52 : vector<32x1xf32> to vector<32x8xf32>
    %54 = arith.subf %50, %53 : vector<32x8xf32>
    %55 = math.exp %54 : vector<32x8xf32>
    %cst_23 = arith.constant dense<0.000000e+00> : vector<32xf32>
    %56 = vector.multi_reduction <add>, %55, %cst_23 [1] : vector<32x8xf32> to vector<32xf32>
    %57 = vector.shape_cast %56 : vector<32xf32> to vector<32x1xf32>
    %58 = tpu.reciprocal %57 : vector<32x1xf32> -> vector<32x1xf32>
    %59 = vector.broadcast %58 : vector<32x1xf32> to vector<32x8xf32>
    %60 = arith.mulf %55, %59 : vector<32x8xf32>
    %cst_24 = arith.constant dense<0.000000e+00> : vector<32x64xf32>
    %61 = tpu.matmul %60, %44, %cst_24 {dimension_numbers = #tpu.dot_dimension_numbers<[1], [0], [0], [1], [0, 0, 1, 1], [], []>} : vector<32x8xf32>, vector<8x64xf32>, vector<32x64xf32> -> vector<32x64xf32>
    %62 = arith.mulf %61, %6 : vector<32x64xf32>
    %63 = vector.extract_strided_slice %62 {offsets = [0, 0], sizes = [8, 64], strides = [1, 1]} : vector<32x64xf32> to vector<8x64xf32>
    %64 = vector.extract_strided_slice %62 {offsets = [8, 0], sizes = [8, 64], strides = [1, 1]} : vector<32x64xf32> to vector<8x64xf32>
    %65 = arith.addf %63, %64 : vector<8x64xf32>
    %66 = vector.extract_strided_slice %62 {offsets = [16, 0], sizes = [8, 64], strides = [1, 1]} : vector<32x64xf32> to vector<8x64xf32>
    %67 = arith.addf %65, %66 : vector<8x64xf32>
    %68 = vector.extract_strided_slice %62 {offsets = [24, 0], sizes = [8, 64], strides = [1, 1]} : vector<32x64xf32> to vector<8x64xf32>
    %69 = arith.addf %67, %68 : vector<8x64xf32>
    %c8_25 = arith.constant 8 : index
    %c0_26 = arith.constant 0 : index
    %70 = vector.load %arg9[%c8_25, %c0_26] : memref<16x64xf32, #tpu.memory_space<vmem>>, vector<8x64xf32>
    tpu.vector_store %arg9[%c8_25, %c0_26], %69 {strides = array<i32>} : memref<16x64xf32, #tpu.memory_space<vmem>>, vector<8x64xf32>,
    %c0_27 = arith.constant 0 : index
    %c0_28 = arith.constant 0 : index
    %71 = vector.load %arg9[%c0_27, %c0_28] : memref<16x64xf32, #tpu.memory_space<vmem>>, vector<16x64xf32>
    %c0_29 = arith.constant 0 : index
    %c0_30 = arith.constant 0 : index
    %72 = vector.load %arg6[%c0_29, %c0_30] : memref<65x32xf32, #tpu.memory_space<vmem>>, vector<64x32xf32>
    %cst_31 = arith.constant dense<0.000000e+00> : vector<16x32xf32>
    %73 = tpu.matmul %71, %72, %cst_31 {dimension_numbers = #tpu.dot_dimension_numbers<[1], [0], [0], [1], [0, 0, 1, 1], [], []>} : vector<16x64xf32>, vector<64x32xf32>, vector<16x32xf32> -> vector<16x32xf32>
    %c64 = arith.constant 64 : index
    %c0_32 = arith.constant 0 : index
    %74 = vector.load %arg6[%c64, %c0_32] : memref<65x32xf32, #tpu.memory_space<vmem>>, vector<1x32xf32>
    %75 = vector.broadcast %74 : vector<1x32xf32> to vector<16x32xf32>
    %76 = arith.addf %73, %75 : vector<16x32xf32>
    %77 = vector.shape_cast %76 : vector<16x32xf32> to vector<2x8x32xf32>
    %c0_33 = arith.constant 0 : index
    %c0_34 = arith.constant 0 : index
    %c0_35 = arith.constant 0 : index
    %78 = vector.load %arg7[%c0_33, %c0_34, %c0_35] : memref<2x8x32xf32, #tpu.memory_space<vmem>>, vector<2x8x32xf32>
    tpu.vector_store %arg7[%c0_33, %c0_34, %c0_35], %77 {strides = array<i32>} : memref<2x8x32xf32, #tpu.memory_space<vmem>>, vector<2x8x32xf32>,
    return
  }
  func.func @transform_0(%arg0: i32) -> (i32, i32, i32) {
    %c0_i32 = arith.constant 0 : i32
    %c0_i32_0 = arith.constant 0 : i32
    %c0_i32_1 = arith.constant 0 : i32
    return %arg0, %c0_i32, %c0_i32_0 : i32, i32, i32
  }
  func.func @transform_1(%arg0: i32) -> (i32, i32) {
    %c0_i32 = arith.constant 0 : i32
    %c0_i32_0 = arith.constant 0 : i32
    %c0_i32_1 = arith.constant 0 : i32
    return %c0_i32, %c0_i32_0 : i32, i32
  }
  func.func @transform_2(%arg0: i32) -> (i32, i32) {
    %c0_i32 = arith.constant 0 : i32
    %c0_i32_0 = arith.constant 0 : i32
    %c0_i32_1 = arith.constant 0 : i32
    return %c0_i32, %c0_i32_0 : i32, i32
  }
  func.func @transform_3(%arg0: i32) -> (i32, i32) {
    %c0_i32 = arith.constant 0 : i32
    %c0_i32_0 = arith.constant 0 : i32
    %c0_i32_1 = arith.constant 0 : i32
    return %c0_i32, %c0_i32_0 : i32, i32
  }
  func.func @transform_4(%arg0: i32) -> (i32, i32) {
    %c0_i32 = arith.constant 0 : i32
    %c0_i32_0 = arith.constant 0 : i32
    %c0_i32_1 = arith.constant 0 : i32
    return %c0_i32, %c0_i32_0 : i32, i32
  }
  func.func @transform_5(%arg0: i32) -> (i32, i32) {
    %c0_i32 = arith.constant 0 : i32
    %c0_i32_0 = arith.constant 0 : i32
    %c0_i32_1 = arith.constant 0 : i32
    return %c0_i32, %c0_i32_0 : i32, i32
  }
  func.func @transform_6(%arg0: i32) -> (i32, i32, i32) {
    %c0_i32 = arith.constant 0 : i32
    %c0_i32_0 = arith.constant 0 : i32
    %c0_i32_1 = arith.constant 0 : i32
    return %arg0, %c0_i32, %c0_i32_0 : i32, i32, i32
  }
}

</mosaic_0001>

<llo_original>
// kernel: tpu_custom_call.1
$region0: #{tpu_custom_call.1}
  #allocation0 [shape = 'u32[]', space=smem, size = 0x4, offset = 0x4, fixed_abs, tag = 'smem constant byte address 0x4 - core index']
  #allocation1 [shape = 'u32[144,128]{1,0:T(1,128)}', space=vmem, size = 0x12000, scoped, tag = 'internal scratch']
  #allocation2 [shape = 'f32[16,192]{1,0:T(8,128)}', space=vmem, size = 0x4000, scoped, tag = 'scratch operand']
  #allocation3 [shape = 'f32[16,64]{1,0:T(8,128)}', space=vmem, size = 0x2000, scoped, tag = 'scratch operand']
  %s0 = inlined_call_operand.vmem [shape: f32[2,8,32], index: 0, kind: input, shape index: {}]
  %s1 = inlined_call_operand.vmem [shape: f32[32,192], index: 1, kind: input, shape index: {}]
  %s2 = inlined_call_operand.vmem [shape: f32[32,64], index: 2, kind: input, shape index: {}]
  %s3 = inlined_call_operand.hbm [shape: f32[32,64], index: 3, kind: input, shape index: {}]
  %s4 = inlined_call_operand.vmem [shape: f32[32,1], index: 4, kind: input, shape index: {}]
  %s5 = inlined_call_operand.vmem [shape: f32[65,32], index: 5, kind: input, shape index: {}]
  %s6 = inlined_call_operand.hbm [shape: f32[2,8,32], index: 6, kind: output, shape index: {}]
  %s7 = sld [smem:[#allocation0]]
  $region38: #{tpu_custom_call.1} parent=0
    _
  %s9 = ssub.s32 1, %s7
  %s10 = scalar_select 0, %s9, %s7
  $region1: #{tpu_custom_call.1} parent=0
    #allocation4 [shape = 'u8[16384]{0}', space=vmem, size = 0x4000, scoped, tag = 'input window, operand 3, single buffered']
    #allocation5 [shape = 's32[1]{0}', space=sflag, size = 0x4, scoped, tag = 'scoped memory for tpu_custom_call.1']
    #allocation6 [shape = 's32[1]{0}', space=sflag, size = 0x4, scoped, tag = 'scoped memory for tpu_custom_call.1']
    #allocation7 [shape = 'u8[8192]{0}', space=vmem, size = 0x2000, scoped, tag = 'output window, operand 0, single buffered']
    %11 = vsyncpa [#allocation5], 0
    %12 = vsyncpa [#allocation6], 0
    // Predicated region
    $region2: #{tpu_custom_call.1} parent=1 // pred_check
      _
    $region3: #{tpu_custom_call.1} parent=1 // pred_check_branch
      %14 = sbr.rel (0) target = $region5
    $region4: #{tpu_custom_call.1} parent=1 // pred_region
      _
    $region5: #{tpu_custom_call.1} parent=1 // pred_fallthru
      _
    // Predicated region
    $region6: #{tpu_custom_call.1} parent=1 // pred_check
      _
    $region7: #{tpu_custom_call.1} parent=1 // pred_check_branch
      %16 = sbr.rel (0) target = $region9
    $region8: #{tpu_custom_call.1} parent=1 // pred_region
      _
    $region9: #{tpu_custom_call.1} parent=1 // pred_fallthru
      _
    // Predicated region
    $region10: #{tpu_custom_call.1} parent=1 // pred_check
      _
    $region11: #{tpu_custom_call.1} parent=1 // pred_check_branch
      %18 = sbr.rel (0) target = $region13
    $region12: #{tpu_custom_call.1} parent=1 // pred_region
      _
    $region13: #{tpu_custom_call.1} parent=1 // pred_fallthru
      _
    // Predicated region
    $region14: #{tpu_custom_call.1} parent=1 // pred_check
      _
    $region15: #{tpu_custom_call.1} parent=1 // pred_check_branch
      %20 = sbr.rel (0) target = $region17
    $region16: #{tpu_custom_call.1} parent=1 // pred_region
      %s22 = ssub.s32 512, 512
      %23 = vsyncadd [#allocation5], %s22
      %s24 = sshll.u32 [#allocation4], 4
      %s25 = int_to_ptr.vmem [resolvable:$true] %s24
      %30 = dma.hbm_to_vmem [thread:$0]  %s3, 512, %s25, [#allocation5], 128, 128, 8
    $region17: #{tpu_custom_call.1} parent=1 // pred_fallthru
      _
    // Predicated region
    $region18: #{tpu_custom_call.1} parent=1 // pred_check
      _
    $region19: #{tpu_custom_call.1} parent=1 // pred_check_branch
      %32 = sbr.rel (0) target = $region21
    $region20: #{tpu_custom_call.1} parent=1 // pred_region
      _
    $region21: #{tpu_custom_call.1} parent=1 // pred_fallthru
      _
    // Predicated region
    $region22: #{tpu_custom_call.1} parent=1 // pred_check
      _
    $region23: #{tpu_custom_call.1} parent=1 // pred_check_branch
      %34 = sbr.rel (0) target = $region25
    $region24: #{tpu_custom_call.1} parent=1 // pred_region
      _
    $region25: #{tpu_custom_call.1} parent=1 // pred_fallthru
      _
    // Predicated region
    $region26: #{tpu_custom_call.1} parent=1 // pred_check
      _
    $region27: #{tpu_custom_call.1} parent=1 // pred_check_branch
      %36 = sbr.rel (0) target = $region29
    $region28: #{tpu_custom_call.1} parent=1 // pred_region
      %37 = dma.done [#allocation5], 512
    $region29: #{tpu_custom_call.1} parent=1 // pred_fallthru
      _
    %v38 = vld [vmem:[%s0] sm:$0xff]
    %v39 = vld [vmem:[%s0 + $0x8] sm:$0xff]
    %v40 = vld [vmem:[%s1] sm:$0xff]
    %v41 = vld [vmem:[%s1 + $0x8] sm:$0xff]
    %v42 = vld [vmem:[%s1 + $0x10] sm:$0xff]
    %v43 = vld [vmem:[%s1 + $0x18] sm:$0xff]
    %v44 = vld [vmem:[%s1 + $0x20] sm:$0xff]
    %v45 = vld [vmem:[%s1 + $0x28] sm:$0xff]
    %v46 = vld [vmem:[%s1 + $0x30] sm:$0xff]
    %v47 = vld [vmem:[%s1 + $0x38] sm:$0xff]
    %vm48 = vcmask 261120
    %v50 = vsel %vm48, %v38, 0
    %v53 = vsel %vm48, %v39, 0
    %55 = vmatprep.subr.mxu0 0.0
    %56 = vmatpush1.msra.mxu0 0.0
    %57 = vmatprep.subr.mxu0 0.0
    %58 = vmatpush1.msra.mxu0 0.0
    %59 = vmatprep.subr.mxu0 0.0
    %60 = vmatpush1.msra.mxu0 0.0
    %61 = vmatprep.subr.mxu0 0.0
    %62 = vmatpush1.msra.mxu0 0.0
    %63 = vmatprep.subr.mxu0 0.0
    %64 = vmatpush1.msra.mxu0 0.0
    %65 = vmatprep.subr.mxu0 0.0
    %66 = vmatpush1.msra.mxu0 0.0
    %67 = vmatprep.subr.mxu0 0.0
    %68 = vmatpush1.msra.mxu0 0.0
    %69 = vmatprep.subr.mxu0 0.0
    %70 = vmatpush1.msra.mxu0 0.0
    %71 = vmatprep.subr.mxu0 0.0
    %72 = vmatpush1.msra.mxu0 0.0
    %73 = vmatprep.subr.mxu0 0.0
    %74 = vmatpush1.msra.mxu0 0.0
    %75 = vmatprep.subr.mxu0 0.0
    %76 = vmatpush1.msra.mxu0 0.0
    %77 = vmatprep.subr.mxu0 0.0
    %78 = vmatpush1.msra.mxu0 0.0
    %79 = vmatprep.subr.mxu0 %v47
    %80 = vmatpush1.msra.mxu0 %v46
    %81 = vmatprep.subr.mxu0 %v45
    %82 = vmatpush1.msra.mxu0 %v44
    %83 = vmatprep.subr.mxu0 %v43
    %84 = vmatpush1.msra.mxu0 %v42
    %85 = vmatprep.subr.mxu0 %v41
    %86 = vmatpush1.msra.mxu0 %v40
    %87 = vmatprep.subr.mxu0 0.0
    %88 = vmatpush2.msra.mxu0 0.0
    %89 = vmatprep.subr.mxu0 0.0
    %90 = vmatpush2.msra.mxu0 0.0
    %91 = vmatprep.subr.mxu0 0.0
    %92 = vmatpush2.msra.mxu0 0.0
    %93 = vmatprep.subr.mxu0 0.0
    %94 = vmatpush2.msra.mxu0 0.0
    %95 = vmatprep.subr.mxu0 0.0
    %96 = vmatpush2.msra.mxu0 0.0
    %97 = vmatprep.subr.mxu0 0.0
    %98 = vmatpush2.msra.mxu0 0.0
    %99 = vmatprep.subr.mxu0 0.0
    %100 = vmatpush2.msra.mxu0 0.0
    %101 = vmatprep.subr.mxu0 0.0
    %102 = vmatpush2.msra.mxu0 0.0
    %103 = vmatprep.subr.mxu0 0.0
    %104 = vmatpush2.msra.mxu0 0.0
    %105 = vmatprep.subr.mxu0 0.0
    %106 = vmatpush2.msra.mxu0 0.0
    %107 = vmatprep.subr.mxu0 0.0
    %108 = vmatpush2.msra.mxu0 0.0
    %109 = vmatprep.subr.mxu0 0.0
    %110 = vmatpush2.msra.mxu0 0.0
    %111 = vmatprep.subr.mxu0 0.0
    %112 = vmatpush2.msra.mxu0 0.0
    %113 = vmatprep.subr.mxu0 0.0
    %114 = vmatpush2.msra.mxu0 0.0
    %115 = vmatprep.subr.mxu0 0.0
    %116 = vmatpush2.msra.mxu0 0.0
    %117 = vmatprep.subr.mxu0 0.0
    %118 = vmatpush2.msra.mxu0 0.0
    %119 = vmatprep.mubr.f32.mxu0 0.0
    %120 = vmatmul.mubr.f32.gmra.mxu0 %v50
    %v121 = vpop.f32.mrf.mxu0
    %v122 = vadd.f32 0.0, %v121
    %v123 = vpop.f32.mrf.mxu0
    %v124 = vadd.f32 0.0, %v123
    %125 = vmatprep.mubr.f32.mxu0 0.0
    %126 = vmatmul.mubr.f32.gmra.mxu0 %v53
    %v127 = vpop.f32.mrf.mxu0
    %v128 = vadd.f32 0.0, %v127
    %v129 = vpop.f32.mrf.mxu0
    %v130 = vadd.f32 0.0, %v129
    %131 = vdwg.mxu0
    %132 = vst [vmem:[#allocation2] sm:$0xff] %v122
    %vm133 = vcmask 523264
    %134 = vst.msk [vmem:[#allocation2 + $0x8] sm:$0xff] %vm133, %v124
    %135 = vst [vmem:[#allocation2 + $0x10] sm:$0xff] %v128
    %136 = vst.msk [vmem:[#allocation2 + $0x18] sm:$0xff] %vm133, %v130
    %v137 = vld [vmem:[%s2] sm:$0xff]
    %v138 = vld [vmem:[%s2 + $0x8] sm:$0xff]
    %v139 = vld [vmem:[%s2 + $0x10] sm:$0xff]
    %v140 = vld [vmem:[%s2 + $0x18] sm:$0xff]
    %v141 = vld [vmem:[#allocation4] sm:$0xff]
    %v142 = vld [vmem:[#allocation4 + $0x8] sm:$0xff]
    %v143 = vld [vmem:[#allocation4 + $0x10] sm:$0xff]
    %v144 = vld [vmem:[#allocation4 + $0x18] sm:$0xff]
    %v145 = vld [vmem:[%s4] sm:$0xff]
    %v146 = vld [vmem:[%s4 + $0x8] sm:$0xff]
    %v147 = vld [vmem:[%s4 + $0x10] sm:$0xff]
    %v148 = vld [vmem:[%s4 + $0x18] sm:$0xff]
    %v149 = vlaneseq
    %v150 = vand.u32 %v149, 127
    %vm151 = vcmp.eq.s32.totalorder %v150, 0
    %v152 = vld [vmem:[#allocation2] sm:$0xff]
    %v153 = vld [vmem:[#allocation2 + $0x8] sm:$0xff]
    %v154 = vmul.f32 %v152, %v137
    %v155 = vmul.f32 %v152, %v138
    %v156 = vmul.f32 %v152, %v139
    %v157 = vmul.f32 %v152, %v140
    %159 = vrot.lane.b32.xlu0 %v152, 64
    %v160 = vpop.permute.xlu0 %159
    %v162 = vsel %vm133, %v154, 0
    %v165 = vsel %vm133, %v155, 0
    %v168 = vsel %vm133, %v156, 0
    %v171 = vsel %vm133, %v157, 0
    %v173 = vsel %vm133, %v160, 0
    %175 = vmatprep.subr.mxu0 0.0
    %176 = vmatpush1.xpose.msra.mxu0 0.0
    %177 = vmatprep.subr.mxu0 0.0
    %178 = vmatpush1.xpose.msra.mxu0 0.0
    %179 = vmatprep.subr.mxu0 0.0
    %180 = vmatpush1.xpose.msra.mxu0 0.0
    %181 = vmatprep.subr.mxu0 0.0
    %182 = vmatpush1.xpose.msra.mxu0 0.0
    %183 = vmatprep.subr.mxu0 0.0
    %184 = vmatpush1.xpose.msra.mxu0 0.0
    %185 = vmatprep.subr.mxu0 0.0
    %186 = vmatpush1.xpose.msra.mxu0 0.0
    %187 = vmatprep.subr.mxu0 0.0
    %188 = vmatpush1.xpose.msra.mxu0 0.0
    %189 = vmatprep.subr.mxu0 0.0
    %190 = vmatpush1.xpose.msra.mxu0 0.0
    %191 = vmatprep.subr.mxu0 0.0
    %192 = vmatpush1.xpose.msra.mxu0 0.0
    %193 = vmatprep.subr.mxu0 0.0
    %194 = vmatpush1.xpose.msra.mxu0 0.0
    %195 = vmatprep.subr.mxu0 0.0
    %196 = vmatpush1.xpose.msra.mxu0 0.0
    %197 = vmatprep.subr.mxu0 0.0
    %198 = vmatpush1.xpose.msra.mxu0 0.0
    %199 = vmatprep.subr.mxu0 0.0
    %200 = vmatpush1.xpose.msra.mxu0 0.0
    %201 = vmatprep.subr.mxu0 0.0
    %202 = vmatpush1.xpose.msra.mxu0 0.0
    %203 = vmatprep.subr.mxu0 0.0
    %204 = vmatpush1.xpose.msra.mxu0 0.0
    %205 = vmatprep.subr.mxu0 0.0
    %206 = vmatpush1.xpose.msra.mxu0 %v173
    %207 = vmatprep.subr.mxu0 0.0
    %208 = vmatpush2.xpose.msra.mxu0 0.0
    %209 = vmatprep.subr.mxu0 0.0
    %210 = vmatpush2.xpose.msra.mxu0 0.0
    %211 = vmatprep.subr.mxu0 0.0
    %212 = vmatpush2.xpose.msra.mxu0 0.0
    %213 = vmatprep.subr.mxu0 0.0
    %214 = vmatpush2.xpose.msra.mxu0 0.0
    %215 = vmatprep.subr.mxu0 0.0
    %216 = vmatpush2.xpose.msra.mxu0 0.0
    %217 = vmatprep.subr.mxu0 0.0
    %218 = vmatpush2.xpose.msra.mxu0 0.0
    %219 = vmatprep.subr.mxu0 0.0
    %220 = vmatpush2.xpose.msra.mxu0 0.0
    %221 = vmatprep.subr.mxu0 0.0
    %222 = vmatpush2.xpose.msra.mxu0 0.0
    %223 = vmatprep.subr.mxu0 0.0
    %224 = vmatpush2.xpose.msra.mxu0 0.0
    %225 = vmatprep.subr.mxu0 0.0
    %226 = vmatpush2.xpose.msra.mxu0 0.0
    %227 = vmatprep.subr.mxu0 0.0
    %228 = vmatpush2.xpose.msra.mxu0 0.0
    %229 = vmatprep.subr.mxu0 0.0
    %230 = vmatpush2.xpose.msra.mxu0 0.0
    %231 = vmatprep.subr.mxu0 0.0
    %232 = vmatpush2.xpose.msra.mxu0 0.0
    %233 = vmatprep.subr.mxu0 0.0
    %234 = vmatpush2.xpose.msra.mxu0 0.0
    %235 = vmatprep.subr.mxu0 0.0
    %236 = vmatpush2.xpose.msra.mxu0 0.0
    %237 = vmatprep.subr.mxu0 0.0
    %238 = vmatpush2.xpose.msra.mxu0 0.0
    %239 = vmatprep.mubr.f32.mxu0 0.0
    %240 = vmatmul.mubr.f32.gmra.mxu0 %v162
    %v241 = vpop.f32.mrf.mxu0
    %v242 = vadd.f32 0.0, %v241
    %v243 = vpop.f32.mrf.mxu0
    %244 = vmatprep.mubr.f32.mxu0 0.0
    %245 = vmatmul.mubr.f32.gmra.mxu0 %v165
    %v246 = vpop.f32.mrf.mxu0
    %v247 = vadd.f32 0.0, %v246
    %v248 = vpop.f32.mrf.mxu0
    %249 = vmatprep.mubr.f32.mxu0 0.0
    %250 = vmatmul.mubr.f32.gmra.mxu0 %v168
    %v251 = vpop.f32.mrf.mxu0
    %v252 = vadd.f32 0.0, %v251
    %v253 = vpop.f32.mrf.mxu0
    %254 = vmatprep.mubr.f32.mxu0 0.0
    %255 = vmatmul.mubr.f32.gmra.mxu0 %v171
    %v256 = vpop.f32.mrf.mxu0
    %v257 = vadd.f32 0.0, %v256
    %v258 = vpop.f32.mrf.mxu0
    %259 = vdwg.mxu0
    %261 = vset.pattern.permute.xlu0 0
    %262 = vperm.xlu0 %261, %v145
    %v263 = vpop.permute.xlu0 %262
    %266 = vset.pattern.permute.xlu0 0
    %267 = vperm.xlu0 %266, %v146
    %v268 = vpop.permute.xlu0 %267
    %271 = vset.pattern.permute.xlu0 0
    %272 = vperm.xlu0 %271, %v147
    %v273 = vpop.permute.xlu0 %272
    %276 = vset.pattern.permute.xlu0 0
    %277 = vperm.xlu0 %276, %v148
    %v278 = vpop.permute.xlu0 %277
    %v280 = vsel %vm151, %v263, %v242
    %v281 = vsel %vm151, %v268, %v247
    %v282 = vsel %vm151, %v273, %v252
    %v283 = vsel %vm151, %v278, %v257
    %vm284 = vcmask 64512
    %v285 = vsel %vm284, %v280, -inf
    %286 = vmax.xlane.f32.xlu0 %v285
    %v287 = vpop.xlane.xlu0 %286
    %v288 = vsel %vm284, %v281, -inf
    %289 = vmax.xlane.f32.xlu0 %v288
    %v290 = vpop.xlane.xlu0 %289
    %v291 = vsel %vm284, %v282, -inf
    %292 = vmax.xlane.f32.xlu0 %v291
    %v293 = vpop.xlane.xlu0 %292
    %v294 = vsel %vm284, %v283, -inf
    %295 = vmax.xlane.f32.xlu0 %v294
    %v296 = vpop.xlane.xlu0 %295
    %v297 = vsub.f32 %v280, %v287
    %v298 = vsub.f32 %v281, %v290
    %v299 = vsub.f32 %v282, %v293
    %v300 = vsub.f32 %v283, %v296
    %v301 = vmul.f32 %v297, 1.442695
    %v302 = vpow.pop %v301
    %v303 = vmul.f32 %v298, 1.442695
    %v304 = vpow.pop %v303
    %v305 = vmul.f32 %v299, 1.442695
    %v306 = vpow.pop %v305
    %v307 = vmul.f32 %v300, 1.442695
    %v308 = vpow.pop %v307
    %v309 = vsel %vm284, %v302, 0.0
    %310 = vadd.xlane.f32.xlu0 %v309
    %v311 = vpop.xlane.xlu0 %310
    %v312 = vsel %vm284, %v304, 0.0
    %313 = vadd.xlane.f32.xlu0 %v312
    %v314 = vpop.xlane.xlu0 %313
    %v315 = vsel %vm284, %v306, 0.0
    %316 = vadd.xlane.f32.xlu0 %v315
    %v317 = vpop.xlane.xlu0 %316
    %v318 = vsel %vm284, %v308, 0.0
    %319 = vadd.xlane.f32.xlu0 %v318
    %v320 = vpop.xlane.xlu0 %319
    %v321 = vrcp.pop %v311
    %v322 = vrcp.pop %v314
    %v323 = vrcp.pop %v317
    %v324 = vrcp.pop %v320
    %v325 = vmul.f32 %v302, %v321
    %v326 = vmul.f32 %v304, %v322
    %v327 = vmul.f32 %v306, %v323
    %v328 = vmul.f32 %v308, %v324
    %v330 = vsel %vm284, %v325, 0
    %v333 = vsel %vm284, %v326, 0
    %v336 = vsel %vm284, %v327, 0
    %v339 = vsel %vm284, %v328, 0
    %341 = vmatprep.subr.mxu0 0.0
    %342 = vmatpush1.msra.mxu0 0.0
    %343 = vmatprep.subr.mxu0 0.0
    %344 = vmatpush1.msra.mxu0 0.0
    %345 = vmatprep.subr.mxu0 0.0
    %346 = vmatpush1.msra.mxu0 0.0
    %347 = vmatprep.subr.mxu0 0.0
    %348 = vmatpush1.msra.mxu0 0.0
    %349 = vmatprep.subr.mxu0 0.0
    %350 = vmatpush1.msra.mxu0 0.0
    %351 = vmatprep.subr.mxu0 0.0
    %352 = vmatpush1.msra.mxu0 0.0
    %353 = vmatprep.subr.mxu0 0.0
    %354 = vmatpush1.msra.mxu0 0.0
    %355 = vmatprep.subr.mxu0 0.0
    %356 = vmatpush1.msra.mxu0 0.0
    %357 = vmatprep.subr.mxu0 0.0
    %358 = vmatpush1.msra.mxu0 0.0
    %359 = vmatprep.subr.mxu0 0.0
    %360 = vmatpush1.msra.mxu0 0.0
    %361 = vmatprep.subr.mxu0 0.0
    %362 = vmatpush1.msra.mxu0 0.0
    %363 = vmatprep.subr.mxu0 0.0
    %364 = vmatpush1.msra.mxu0 0.0
    %365 = vmatprep.subr.mxu0 0.0
    %366 = vmatpush1.msra.mxu0 0.0
    %367 = vmatprep.subr.mxu0 0.0
    %368 = vmatpush1.msra.mxu0 0.0
    %369 = vmatprep.subr.mxu0 0.0
    %370 = vmatpush1.msra.mxu0 0.0
    %371 = vmatprep.subr.mxu0 0.0
    %372 = vmatpush1.msra.mxu0 %v153
    %373 = vmatprep.subr.mxu0 0.0
    %374 = vmatpush2.msra.mxu0 0.0
    %375 = vmatprep.subr.mxu0 0.0
    %376 = vmatpush2.msra.mxu0 0.0
    %377 = vmatprep.subr.mxu0 0.0
    %378 = vmatpush2.msra.mxu0 0.0
    %379 = vmatprep.subr.mxu0 0.0
    %380 = vmatpush2.msra.mxu0 0.0
    %381 = vmatprep.subr.mxu0 0.0
    %382 = vmatpush2.msra.mxu0 0.0
    %383 = vmatprep.subr.mxu0 0.0
    %384 = vmatpush2.msra.mxu0 0.0
    %385 = vmatprep.subr.mxu0 0.0
    %386 = vmatpush2.msra.mxu0 0.0
    %387 = vmatprep.subr.mxu0 0.0
    %388 = vmatpush2.msra.mxu0 0.0
    %389 = vmatprep.subr.mxu0 0.0
    %390 = vmatpush2.msra.mxu0 0.0
    %391 = vmatprep.subr.mxu0 0.0
    %392 = vmatpush2.msra.mxu0 0.0
    %393 = vmatprep.subr.mxu0 0.0
    %394 = vmatpush2.msra.mxu0 0.0
    %395 = vmatprep.subr.mxu0 0.0
    %396 = vmatpush2.msra.mxu0 0.0
    %397 = vmatprep.subr.mxu0 0.0
    %398 = vmatpush2.msra.mxu0 0.0
    %399 = vmatprep.subr.mxu0 0.0
    %400 = vmatpush2.msra.mxu0 0.0
    %401 = vmatprep.subr.mxu0 0.0
    %402 = vmatpush2.msra.mxu0 0.0
    %403 = vmatprep.subr.mxu0 0.0
    %404 = vmatpush2.msra.mxu0 0.0
    %405 = vmatprep.mubr.f32.mxu0 0.0
    %406 = vmatmul.mubr.f32.gmra.mxu0 %v330
    %v407 = vpop.f32.mrf.mxu0
    %v408 = vadd.f32 0.0, %v407
    %v409 = vpop.f32.mrf.mxu0
    %410 = vmatprep.mubr.f32.mxu0 0.0
    %411 = vmatmul.mubr.f32.gmra.mxu0 %v333
    %v412 = vpop.f32.mrf.mxu0
    %v413 = vadd.f32 0.0, %v412
    %v414 = vpop.f32.mrf.mxu0
    %415 = vmatprep.mubr.f32.mxu0 0.0
    %416 = vmatmul.mubr.f32.gmra.mxu0 %v336
    %v417 = vpop.f32.mrf.mxu0
    %v418 = vadd.f32 0.0, %v417
    %v419 = vpop.f32.mrf.mxu0
    %420 = vmatprep.mubr.f32.mxu0 0.0
    %421 = vmatmul.mubr.f32.gmra.mxu0 %v339
    %v422 = vpop.f32.mrf.mxu0
    %v423 = vadd.f32 0.0, %v422
    %v424 = vpop.f32.mrf.mxu0
    %425 = vdwg.mxu0
    %v426 = vmul.f32 %v408, %v141
    %v427 = vmul.f32 %v413, %v142
    %v428 = vmul.f32 %v418, %v143
    %v429 = vmul.f32 %v423, %v144
    %v430 = vadd.f32 %v426, %v427
    %v431 = vadd.f32 %v430, %v428
    %v432 = vadd.f32 %v431, %v429
    %433 = vst.msk [vmem:[#allocation3] sm:$0xff] %vm133, %v432
    %v434 = vld [vmem:[#allocation2 + $0x10] sm:$0xff]
    %v435 = vld [vmem:[#allocation2 + $0x18] sm:$0xff]
    %v436 = vmul.f32 %v434, %v137
    %v437 = vmul.f32 %v434, %v138
    %v438 = vmul.f32 %v434, %v139
    %v439 = vmul.f32 %v434, %v140
    %441 = vrot.lane.b32.xlu0 %v434, 64
    %v442 = vpop.permute.xlu0 %441
    %v444 = vsel %vm133, %v436, 0
    %v447 = vsel %vm133, %v437, 0
    %v450 = vsel %vm133, %v438, 0
    %v453 = vsel %vm133, %v439, 0
    %v455 = vsel %vm133, %v442, 0
    %457 = vmatprep.subr.mxu0 0.0
    %458 = vmatpush1.xpose.msra.mxu0 0.0
    %459 = vmatprep.subr.mxu0 0.0
    %460 = vmatpush1.xpose.msra.mxu0 0.0
    %461 = vmatprep.subr.mxu0 0.0
    %462 = vmatpush1.xpose.msra.mxu0 0.0
    %463 = vmatprep.subr.mxu0 0.0
    %464 = vmatpush1.xpose.msra.mxu0 0.0
    %465 = vmatprep.subr.mxu0 0.0
    %466 = vmatpush1.xpose.msra.mxu0 0.0
    %467 = vmatprep.subr.mxu0 0.0
    %468 = vmatpush1.xpose.msra.mxu0 0.0
    %469 = vmatprep.subr.mxu0 0.0
    %470 = vmatpush1.xpose.msra.mxu0 0.0
    %471 = vmatprep.subr.mxu0 0.0
    %472 = vmatpush1.xpose.msra.mxu0 0.0
    %473 = vmatprep.subr.mxu0 0.0
    %474 = vmatpush1.xpose.msra.mxu0 0.0
    %475 = vmatprep.subr.mxu0 0.0
    %476 = vmatpush1.xpose.msra.mxu0 0.0
    %477 = vmatprep.subr.mxu0 0.0
    %478 = vmatpush1.xpose.msra.mxu0 0.0
    %479 = vmatprep.subr.mxu0 0.0
    %480 = vmatpush1.xpose.msra.mxu0 0.0
    %481 = vmatprep.subr.mxu0 0.0
    %482 = vmatpush1.xpose.msra.mxu0 0.0
    %483 = vmatprep.subr.mxu0 0.0
    %484 = vmatpush1.xpose.msra.mxu0 0.0
    %485 = vmatprep.subr.mxu0 0.0
    %486 = vmatpush1.xpose.msra.mxu0 0.0
    %487 = vmatprep.subr.mxu0 0.0
    %488 = vmatpush1.xpose.msra.mxu0 %v455
    %489 = vmatprep.subr.mxu0 0.0
    %490 = vmatpush2.xpose.msra.mxu0 0.0
    %491 = vmatprep.subr.mxu0 0.0
    %492 = vmatpush2.xpose.msra.mxu0 0.0
    %493 = vmatprep.subr.mxu0 0.0
    %494 = vmatpush2.xpose.msra.mxu0 0.0
    %495 = vmatprep.subr.mxu0 0.0
    %496 = vmatpush2.xpose.msra.mxu0 0.0
    %497 = vmatprep.subr.mxu0 0.0
    %498 = vmatpush2.xpose.msra.mxu0 0.0
    %499 = vmatprep.subr.mxu0 0.0
    %500 = vmatpush2.xpose.msra.mxu0 0.0
    %501 = vmatprep.subr.mxu0 0.0
    %502 = vmatpush2.xpose.msra.mxu0 0.0
    %503 = vmatprep.subr.mxu0 0.0
    %504 = vmatpush2.xpose.msra.mxu0 0.0
    %505 = vmatprep.subr.mxu0 0.0
    %506 = vmatpush2.xpose.msra.mxu0 0.0
    %507 = vmatprep.subr.mxu0 0.0
    %508 = vmatpush2.xpose.msra.mxu0 0.0
    %509 = vmatprep.subr.mxu0 0.0
    %510 = vmatpush2.xpose.msra.mxu0 0.0
    %511 = vmatprep.subr.mxu0 0.0
    %512 = vmatpush2.xpose.msra.mxu0 0.0
    %513 = vmatprep.subr.mxu0 0.0
    %514 = vmatpush2.xpose.msra.mxu0 0.0
    %515 = vmatprep.subr.mxu0 0.0
    %516 = vmatpush2.xpose.msra.mxu0 0.0
    %517 = vmatprep.subr.mxu0 0.0
    %518 = vmatpush2.xpose.msra.mxu0 0.0
    %519 = vmatprep.subr.mxu0 0.0
    %520 = vmatpush2.xpose.msra.mxu0 0.0
    %521 = vmatprep.mubr.f32.mxu0 0.0
    %522 = vmatmul.mubr.f32.gmra.mxu0 %v444
    %v523 = vpop.f32.mrf.mxu0
    %v524 = vadd.f32 0.0, %v523
    %v525 = vpop.f32.mrf.mxu0
    %526 = vmatprep.mubr.f32.mxu0 0.0
    %527 = vmatmul.mubr.f32.gmra.mxu0 %v447
    %v528 = vpop.f32.mrf.mxu0
    %v529 = vadd.f32 0.0, %v528
    %v530 = vpop.f32.mrf.mxu0
    %531 = vmatprep.mubr.f32.mxu0 0.0
    %532 = vmatmul.mubr.f32.gmra.mxu0 %v450
    %v533 = vpop.f32.mrf.mxu0
    %v534 = vadd.f32 0.0, %v533
    %v535 = vpop.f32.mrf.mxu0
    %536 = vmatprep.mubr.f32.mxu0 0.0
    %537 = vmatmul.mubr.f32.gmra.mxu0 %v453
    %v538 = vpop.f32.mrf.mxu0
    %v539 = vadd.f32 0.0, %v538
    %v540 = vpop.f32.mrf.mxu0
    %541 = vdwg.mxu0
    %v542 = vsel %vm151, %v263, %v524
    %v543 = vsel %vm151, %v268, %v529
    %v544 = vsel %vm151, %v273, %v534
    %v545 = vsel %vm151, %v278, %v539
    %v546 = vsel %vm284, %v542, -inf
    %547 = vmax.xlane.f32.xlu0 %v546
    %v548 = vpop.xlane.xlu0 %547
    %v549 = vsel %vm284, %v543, -inf
    %550 = vmax.xlane.f32.xlu0 %v549
    %v551 = vpop.xlane.xlu0 %550
    %v552 = vsel %vm284, %v544, -inf
    %553 = vmax.xlane.f32.xlu0 %v552
    %v554 = vpop.xlane.xlu0 %553
    %v555 = vsel %vm284, %v545, -inf
    %556 = vmax.xlane.f32.xlu0 %v555
    %v557 = vpop.xlane.xlu0 %556
    %v558 = vsub.f32 %v542, %v548
    %v559 = vsub.f32 %v543, %v551
    %v560 = vsub.f32 %v544, %v554
    %v561 = vsub.f32 %v545, %v557
    %v562 = vmul.f32 %v558, 1.442695
    %v563 = vpow.pop %v562
    %v564 = vmul.f32 %v559, 1.442695
    %v565 = vpow.pop %v564
    %v566 = vmul.f32 %v560, 1.442695
    %v567 = vpow.pop %v566
    %v568 = vmul.f32 %v561, 1.442695
    %v569 = vpow.pop %v568
    %v570 = vsel %vm284, %v563, 0.0
    %571 = vadd.xlane.f32.xlu0 %v570
    %v572 = vpop.xlane.xlu0 %571
    %v573 = vsel %vm284, %v565, 0.0
    %574 = vadd.xlane.f32.xlu0 %v573
    %v575 = vpop.xlane.xlu0 %574
    %v576 = vsel %vm284, %v567, 0.0
    %577 = vadd.xlane.f32.xlu0 %v576
    %v578 = vpop.xlane.xlu0 %577
    %v579 = vsel %vm284, %v569, 0.0
    %580 = vadd.xlane.f32.xlu0 %v579
    %v581 = vpop.xlane.xlu0 %580
    %v582 = vrcp.pop %v572
    %v583 = vrcp.pop %v575
    %v584 = vrcp.pop %v578
    %v585 = vrcp.pop %v581
    %v586 = vmul.f32 %v563, %v582
    %v587 = vmul.f32 %v565, %v583
    %v588 = vmul.f32 %v567, %v584
    %v589 = vmul.f32 %v569, %v585
    %v591 = vsel %vm284, %v586, 0
    %v594 = vsel %vm284, %v587, 0
    %v597 = vsel %vm284, %v588, 0
    %v600 = vsel %vm284, %v589, 0
    %602 = vmatprep.subr.mxu0 0.0
    %603 = vmatpush1.msra.mxu0 0.0
    %604 = vmatprep.subr.mxu0 0.0
    %605 = vmatpush1.msra.mxu0 0.0
    %606 = vmatprep.subr.mxu0 0.0
    %607 = vmatpush1.msra.mxu0 0.0
    %608 = vmatprep.subr.mxu0 0.0
    %609 = vmatpush1.msra.mxu0 0.0
    %610 = vmatprep.subr.mxu0 0.0
    %611 = vmatpush1.msra.mxu0 0.0
    %612 = vmatprep.subr.mxu0 0.0
    %613 = vmatpush1.msra.mxu0 0.0
    %614 = vmatprep.subr.mxu0 0.0
    %615 = vmatpush1.msra.mxu0 0.0
    %616 = vmatprep.subr.mxu0 0.0
    %617 = vmatpush1.msra.mxu0 0.0
    %618 = vmatprep.subr.mxu0 0.0
    %619 = vmatpush1.msra.mxu0 0.0
    %620 = vmatprep.subr.mxu0 0.0
    %621 = vmatpush1.msra.mxu0 0.0
    %622 = vmatprep.subr.mxu0 0.0
    %623 = vmatpush1.msra.mxu0 0.0
    %624 = vmatprep.subr.mxu0 0.0
    %625 = vmatpush1.msra.mxu0 0.0
    %626 = vmatprep.subr.mxu0 0.0
    %627 = vmatpush1.msra.mxu0 0.0
    %628 = vmatprep.subr.mxu0 0.0
    %629 = vmatpush1.msra.mxu0 0.0
    %630 = vmatprep.subr.mxu0 0.0
    %631 = vmatpush1.msra.mxu0 0.0
    %632 = vmatprep.subr.mxu0 0.0
    %633 = vmatpush1.msra.mxu0 %v435
    %634 = vmatprep.subr.mxu0 0.0
    %635 = vmatpush2.msra.mxu0 0.0
    %636 = vmatprep.subr.mxu0 0.0
    %637 = vmatpush2.msra.mxu0 0.0
    %638 = vmatprep.subr.mxu0 0.0
    %639 = vmatpush2.msra.mxu0 0.0
    %640 = vmatprep.subr.mxu0 0.0
    %641 = vmatpush2.msra.mxu0 0.0
    %642 = vmatprep.subr.mxu0 0.0
    %643 = vmatpush2.msra.mxu0 0.0
    %644 = vmatprep.subr.mxu0 0.0
    %645 = vmatpush2.msra.mxu0 0.0
    %646 = vmatprep.subr.mxu0 0.0
    %647 = vmatpush2.msra.mxu0 0.0
    %648 = vmatprep.subr.mxu0 0.0
    %649 = vmatpush2.msra.mxu0 0.0
    %650 = vmatprep.subr.mxu0 0.0
    %651 = vmatpush2.msra.mxu0 0.0
    %652 = vmatprep.subr.mxu0 0.0
    %653 = vmatpush2.msra.mxu0 0.0
    %654 = vmatprep.subr.mxu0 0.0
    %655 = vmatpush2.msra.mxu0 0.0
    %656 = vmatprep.subr.mxu0 0.0
    %657 = vmatpush2.msra.mxu0 0.0
    %658 = vmatprep.subr.mxu0 0.0
    %659 = vmatpush2.msra.mxu0 0.0
    %660 = vmatprep.subr.mxu0 0.0
    %661 = vmatpush2.msra.mxu0 0.0
    %662 = vmatprep.subr.mxu0 0.0
    %663 = vmatpush2.msra.mxu0 0.0
    %664 = vmatprep.subr.mxu0 0.0
    %665 = vmatpush2.msra.mxu0 0.0
    %666 = vmatprep.mubr.f32.mxu0 0.0
    %667 = vmatmul.mubr.f32.gmra.mxu0 %v591
    %v668 = vpop.f32.mrf.mxu0
    %v669 = vadd.f32 0.0, %v668
    %v670 = vpop.f32.mrf.mxu0
    %671 = vmatprep.mubr.f32.mxu0 0.0
    %672 = vmatmul.mubr.f32.gmra.mxu0 %v594
    %v673 = vpop.f32.mrf.mxu0
    %v674 = vadd.f32 0.0, %v673
    %v675 = vpop.f32.mrf.mxu0
    %676 = vmatprep.mubr.f32.mxu0 0.0
    %677 = vmatmul.mubr.f32.gmra.mxu0 %v597
    %v678 = vpop.f32.mrf.mxu0
    %v679 = vadd.f32 0.0, %v678
    %v680 = vpop.f32.mrf.mxu0
    %681 = vmatprep.mubr.f32.mxu0 0.0
    %682 = vmatmul.mubr.f32.gmra.mxu0 %v600
    %v683 = vpop.f32.mrf.mxu0
    %v684 = vadd.f32 0.0, %v683
    %v685 = vpop.f32.mrf.mxu0
    %686 = vdwg.mxu0
    %v687 = vmul.f32 %v669, %v141
    %v688 = vmul.f32 %v674, %v142
    %v689 = vmul.f32 %v679, %v143
    %v690 = vmul.f32 %v684, %v144
    %v691 = vadd.f32 %v687, %v688
    %v692 = vadd.f32 %v691, %v689
    %v693 = vadd.f32 %v692, %v690
    %694 = vst.msk [vmem:[#allocation3 + $0x8] sm:$0xff] %vm133, %v693
    %v695 = vld [vmem:[#allocation3] sm:$0xff]
    %v696 = vld [vmem:[#allocation3 + $0x8] sm:$0xff]
    %v697 = vld [vmem:[%s5] sm:$0xff]
    %v698 = vld [vmem:[%s5 + $0x8] sm:$0xff]
    %v699 = vld [vmem:[%s5 + $0x10] sm:$0xff]
    %v700 = vld [vmem:[%s5 + $0x18] sm:$0xff]
    %v701 = vld [vmem:[%s5 + $0x20] sm:$0xff]
    %v702 = vld [vmem:[%s5 + $0x28] sm:$0xff]
    %v703 = vld [vmem:[%s5 + $0x30] sm:$0xff]
    %v704 = vld [vmem:[%s5 + $0x38] sm:$0xff]
    %v705 = vld [vmem:[%s5 + $0x40] sm:$0x1]
    %v706 = vlaneseq
    %v707 = vshrl.u32 %v706, 7
    %v708 = vsub.s32 0, %v707
    %v709 = vrot.slane %v705, %v708
    %v711 = vsel %vm133, %v695, 0
    %v714 = vsel %vm133, %v696, 0
    %716 = vmatprep.subr.mxu0 0.0
    %717 = vmatpush1.msra.mxu0 0.0
    %718 = vmatprep.subr.mxu0 0.0
    %719 = vmatpush1.msra.mxu0 0.0
    %720 = vmatprep.subr.mxu0 0.0
    %721 = vmatpush1.msra.mxu0 0.0
    %722 = vmatprep.subr.mxu0 0.0
    %723 = vmatpush1.msra.mxu0 0.0
    %724 = vmatprep.subr.mxu0 0.0
    %725 = vmatpush1.msra.mxu0 0.0
    %726 = vmatprep.subr.mxu0 0.0
    %727 = vmatpush1.msra.mxu0 0.0
    %728 = vmatprep.subr.mxu0 0.0
    %729 = vmatpush1.msra.mxu0 0.0
    %730 = vmatprep.subr.mxu0 0.0
    %731 = vmatpush1.msra.mxu0 0.0
    %732 = vmatprep.subr.mxu0 0.0
    %733 = vmatpush1.msra.mxu0 %v704
    %734 = vmatprep.subr.mxu0 0.0
    %735 = vmatpush1.msra.mxu0 %v703
    %736 = vmatprep.subr.mxu0 0.0
    %737 = vmatpush1.msra.mxu0 %v702
    %738 = vmatprep.subr.mxu0 0.0
    %739 = vmatpush1.msra.mxu0 %v701
    %740 = vmatprep.subr.mxu0 0.0
    %741 = vmatpush1.msra.mxu0 %v700
    %742 = vmatprep.subr.mxu0 0.0
    %743 = vmatpush1.msra.mxu0 %v699
    %744 = vmatprep.subr.mxu0 0.0
    %745 = vmatpush1.msra.mxu0 %v698
    %746 = vmatprep.subr.mxu0 0.0
    %747 = vmatpush1.msra.mxu0 %v697
    %748 = vmatprep.subr.mxu0 0.0
    %749 = vmatpush2.msra.mxu0 0.0
    %750 = vmatprep.subr.mxu0 0.0
    %751 = vmatpush2.msra.mxu0 0.0
    %752 = vmatprep.subr.mxu0 0.0
    %753 = vmatpush2.msra.mxu0 0.0
    %754 = vmatprep.subr.mxu0 0.0
    %755 = vmatpush2.msra.mxu0 0.0
    %756 = vmatprep.subr.mxu0 0.0
    %757 = vmatpush2.msra.mxu0 0.0
    %758 = vmatprep.subr.mxu0 0.0
    %759 = vmatpush2.msra.mxu0 0.0
    %760 = vmatprep.subr.mxu0 0.0
    %761 = vmatpush2.msra.mxu0 0.0
    %762 = vmatprep.subr.mxu0 0.0
    %763 = vmatpush2.msra.mxu0 0.0
    %764 = vmatprep.subr.mxu0 0.0
    %765 = vmatpush2.msra.mxu0 0.0
    %766 = vmatprep.subr.mxu0 0.0
    %767 = vmatpush2.msra.mxu0 0.0
    %768 = vmatprep.subr.mxu0 0.0
    %769 = vmatpush2.msra.mxu0 0.0
    %770 = vmatprep.subr.mxu0 0.0
    %771 = vmatpush2.msra.mxu0 0.0
    %772 = vmatprep.subr.mxu0 0.0
    %773 = vmatpush2.msra.mxu0 0.0
    %774 = vmatprep.subr.mxu0 0.0
    %775 = vmatpush2.msra.mxu0 0.0
    %776 = vmatprep.subr.mxu0 0.0
    %777 = vmatpush2.msra.mxu0 0.0
    %778 = vmatprep.subr.mxu0 0.0
    %779 = vmatpush2.msra.mxu0 0.0
    %780 = vmatprep.mubr.f32.mxu0 0.0
    %781 = vmatmul.mubr.f32.gmra.mxu0 %v711
    %v782 = vpop.f32.mrf.mxu0
    %v783 = vadd.f32 %v709, %v782
    %v784 = vpop.f32.mrf.mxu0
    %785 = vmatprep.mubr.f32.mxu0 0.0
    %786 = vmatmul.mubr.f32.gmra.mxu0 %v714
    %v787 = vpop.f32.mrf.mxu0
    %v788 = vadd.f32 %v709, %v787
    %v789 = vpop.f32.mrf.mxu0
    %790 = vdwg.mxu0
    %791 = vst.msk [vmem:[#allocation7] sm:$0xff] %vm48, %v783
    %792 = vst.msk [vmem:[#allocation7 + $0x8] sm:$0xff] %vm48, %v788
    // Predicated region
    $region30: #{tpu_custom_call.1} parent=1 // pred_check
      _
    $region31: #{tpu_custom_call.1} parent=1 // pred_check_branch
      %794 = sbr.rel (0) target = $region33
    $region32: #{tpu_custom_call.1} parent=1 // pred_region
      %s796 = ssub.s32 256, 256
      %797 = vsyncadd [#allocation6], %s796
      %s798 = sshll.u32 [#allocation7], 4
      %s799 = int_to_ptr.vmem [resolvable:$true] %s798
      %804 = dma.vmem_to_hbm [thread:$0]  %s799, 256, %s6, [#allocation6], 128, 128, 8
    $region33: #{tpu_custom_call.1} parent=1 // pred_fallthru
      _
    // Predicated region
    $region34: #{tpu_custom_call.1} parent=1 // pred_check
      _
    $region35: #{tpu_custom_call.1} parent=1 // pred_check_branch
      %806 = sbr.rel (0) target = $region37
    $region36: #{tpu_custom_call.1} parent=1 // pred_region
      %807 = dma.done [#allocation6], 256
    $region37: #{tpu_custom_call.1} parent=1 // pred_fallthru
      _
    %808 = vsyncpa [#allocation5], 1
    %809 = vsyncpa [#allocation6], 1

</llo_original>
